<compile_context>
chip_gen: v7x
topology: tpu7x:2x2x1
jax: 0.10.0
libtpu: 0.0.40
codegen_flags: <defaults>
</compile_context>

<pallas_src>
import jax
import jax.numpy as jnp
from jax.experimental import pallas as pl
from jax.experimental.pallas import tpu as pltpu


def _linear_add_relu_kernel(x1_ref, wt_ref, x2_ref, o_ref):
    # x1: (TB, IN), w_t: (IN, OUT) pre-transposed, x2: (TB, OUT)
    v1 = jnp.dot(x1_ref[...], wt_ref[...], preferred_element_type=jnp.float32)
    v2 = v1 + x2_ref[...]
    # TODO(synk): OUT=8 keeps output stores 8 lanes wide (masked vst); packing
    # (TB, 8) -> (TB//16, 128) would widen them, but x1 (IN=64) dominates HBM
    # traffic here so the reshape/relayout cost is not worth it.
    o_ref[...] = jnp.maximum(v2, 0.0).astype(o_ref.dtype)


def linear_add_relu(x1, w, x2, *, tile_b=2048):
    """x1: (B, 64), w: (8, 64) [PyTorch nn.Linear layout], x2: (B, 8)."""
    B, IN = x1.shape
    OUT = w.shape[0]
    # Pre-transpose weight once outside the kernel (weights are static):
    # feeds the MXU in [K-on-sublane, N-on-lane] layout, no in-kernel XLU work.
    w_t = w.T  # (IN, OUT)

    if B <= tile_b:
        # Single-block path: block_shape == full array satisfies the (8,128)
        # rule for any B (including the spec's B=1).
        tb = B
        bp = B
        x1_p, x2_p = x1, x2
    else:
        tb = tile_b
        bp = pl.cdiv(B, tb) * tb
        pad = bp - B
        if pad:
            x1_p = jnp.pad(x1, ((0, pad), (0, 0)))
            x2_p = jnp.pad(x2, ((0, pad), (0, 0)))
        else:
            x1_p, x2_p = x1, x2

    out = pl.pallas_call(
        _linear_add_relu_kernel,
        out_shape=jax.ShapeDtypeStruct((bp, OUT), jnp.float32),
        grid_spec=pl.GridSpec(
            grid=(bp // tb,),
            in_specs=[
                pl.BlockSpec((tb, IN), lambda i: (i, 0)),    # x1 row tile
                pl.BlockSpec((IN, OUT), lambda i: (0, 0)),   # weight, resident
                pl.BlockSpec((tb, OUT), lambda i: (i, 0)),   # x2 row tile
            ],
            out_specs=pl.BlockSpec((tb, OUT), lambda i: (i, 0)),
        ),
        compiler_params=pltpu.CompilerParams(
            # Row tiles are independent -> shard across TCs on v7x megacore.
            dimension_semantics=("parallel",),
        ),
    )(x1_p, w_t, x2_p)

    return out[:B] if bp != B else out


if __name__ == "__main__":
    key = jax.random.PRNGKey(0)
    k1, k2, k3, k4, k5 = jax.random.split(key, 5)

    IN, OUT = 64, 8
    # deterministic "Linear" weight, shape [out_features, in_features]
    w = jax.random.normal(k3, (OUT, IN), dtype=jnp.float32) * (1.0 / jnp.sqrt(IN))

    # --- Case 1: exact spec shapes (B=1) -> single-block path ---------------
    x1 = jax.random.normal(k1, (1, IN), dtype=jnp.float32)
    x2 = jax.random.normal(k2, (1, OUT), dtype=jnp.float32)
    out = jax.block_until_ready(linear_add_relu(x1, w, x2))
    ref = jnp.maximum(x1 @ w.T + x2, 0.0)
    assert out.shape == (1, OUT)
    assert jnp.allclose(out, ref, atol=1e-5, rtol=1e-5)

    # --- Case 2: batched + tiled path (non-multiple of tile, exercises pad) --
    Bb = 600
    x1b = jax.random.normal(k4, (Bb, IN), dtype=jnp.float32)
    x2b = jax.random.normal(k5, (Bb, OUT), dtype=jnp.float32)
    outb = jax.block_until_ready(linear_add_relu(x1b, w, x2b, tile_b=256))
    refb = jnp.maximum(x1b @ w.T + x2b, 0.0)
    assert outb.shape == (Bb, OUT)
    assert jnp.allclose(outb, refb, atol=1e-5, rtol=1e-5)

    print("KERNEL_OK")
</pallas_src>

<mosaic_0001>
module attributes {stable_mosaic.version = 11 : i64} {
  func.func @_linear_add_relu_kernel(%arg0: i32, %arg1: memref<1x64xf32, #tpu.memory_space<vmem>>, %arg2: memref<64x8xf32, #tpu.memory_space<vmem>>, %arg3: memref<1x8xf32, #tpu.memory_space<vmem>>, %arg4: memref<1x8xf32, #tpu.memory_space<vmem>>) attributes {dimension_semantics = [#tpu.dimension_semantics<parallel>], iteration_bounds = array<i64: 1>, scalar_prefetch = 0 : i64, scratch_operands = 0 : i64, tpu.core_type = #tpu.core_type<tc>, window_params = [{transform_indices = @transform_0, window_bounds = array<i64: 1, 64>}, {pipeline_mode = #tpu.pipeline_mode<synchronous>, transform_indices = @transform_1, window_bounds = array<i64: 64, 8>}, {transform_indices = @transform_2, window_bounds = array<i64: 1, 8>}, {transform_indices = @transform_3, window_bounds = array<i64: 1, 8>}]} {
    %c0 = arith.constant 0 : index
    %c0_0 = arith.constant 0 : index
    %0 = vector.load %arg1[%c0, %c0_0] : memref<1x64xf32, #tpu.memory_space<vmem>>, vector<1x64xf32>
    %c0_1 = arith.constant 0 : index
    %c0_2 = arith.constant 0 : index
    %1 = vector.load %arg2[%c0_1, %c0_2] : memref<64x8xf32, #tpu.memory_space<vmem>>, vector<64x8xf32>
    %cst = arith.constant dense<0.000000e+00> : vector<1x8xf32>
    %2 = tpu.matmul %0, %1, %cst {dimension_numbers = #tpu.dot_dimension_numbers<[1], [0], [0], [1], [0, 0, 1, 1], [], []>} : vector<1x64xf32>, vector<64x8xf32>, vector<1x8xf32> -> vector<1x8xf32>
    %c0_3 = arith.constant 0 : index
    %c0_4 = arith.constant 0 : index
    %3 = vector.load %arg3[%c0_3, %c0_4] : memref<1x8xf32, #tpu.memory_space<vmem>>, vector<1x8xf32>
    %4 = arith.addf %2, %3 : vector<1x8xf32>
    %cst_5 = arith.constant 0.000000e+00 : f32
    %5 = vector.broadcast %cst_5 : f32 to vector<1x8xf32>
    %6 = arith.maximumf %4, %5 : vector<1x8xf32>
    %c0_6 = arith.constant 0 : index
    %c0_7 = arith.constant 0 : index
    %7 = vector.load %arg4[%c0_6, %c0_7] : memref<1x8xf32, #tpu.memory_space<vmem>>, vector<1x8xf32>
    tpu.vector_store %arg4[%c0_6, %c0_7], %6 {strides = array<i32>} : memref<1x8xf32, #tpu.memory_space<vmem>>, vector<1x8xf32>,
    return
  }
  func.func @transform_0(%arg0: i32) -> (i32, i32) {
    %c0_i32 = arith.constant 0 : i32
    %c0_i32_0 = arith.constant 0 : i32
    return %arg0, %c0_i32 : i32, i32
  }
  func.func @transform_1(%arg0: i32) -> (i32, i32) {
    %c0_i32 = arith.constant 0 : i32
    %c0_i32_0 = arith.constant 0 : i32
    %c0_i32_1 = arith.constant 0 : i32
    return %c0_i32, %c0_i32_0 : i32, i32
  }
  func.func @transform_2(%arg0: i32) -> (i32, i32) {
    %c0_i32 = arith.constant 0 : i32
    %c0_i32_0 = arith.constant 0 : i32
    return %arg0, %c0_i32 : i32, i32
  }
  func.func @transform_3(%arg0: i32) -> (i32, i32) {
    %c0_i32 = arith.constant 0 : i32
    %c0_i32_0 = arith.constant 0 : i32
    return %arg0, %c0_i32 : i32, i32
  }
}

</mosaic_0001>

<llo_original>
// kernel: tpu_custom_call.1
$region0: #{tpu_custom_call.1}
  #allocation0 [shape = 'u32[]', space=smem, size = 0x4, offset = 0x4, fixed_abs, tag = 'smem constant byte address 0x4 - core index']
  #allocation1 [shape = 'u32[144,128]{1,0:T(1,128)}', space=vmem, size = 0x12000, scoped, tag = 'internal scratch']
  %s0 = inlined_call_operand.vmem [shape: f32[1,64], index: 0, kind: input, shape index: {}]
  %s1 = inlined_call_operand.vmem [shape: f32[64,8], index: 1, kind: input, shape index: {}]
  %s2 = inlined_call_operand.vmem [shape: f32[1,8], index: 2, kind: input, shape index: {}]
  %s3 = inlined_call_operand.hbm [shape: f32[1,8], index: 3, kind: output, shape index: {}]
  %s4 = sld [smem:[#allocation0]]
  $region22: #{tpu_custom_call.1} parent=0
    _
  %s6 = ssub.s32 1, %s4
  %s7 = scalar_select 0, %s6, %s4
  $region1: #{tpu_custom_call.1} parent=0
    #allocation2 [shape = 'u8[512]{0}', space=vmem, size = 0x400, scoped, tag = 'output window, operand 0, single buffered']
    #allocation3 [shape = 's32[1]{0}', space=sflag, size = 0x4, scoped, tag = 'scoped memory for tpu_custom_call.1']
    %8 = vsyncpa [#allocation3], 0
    // Predicated region
    $region2: #{tpu_custom_call.1} parent=1 // pred_check
      _
    $region3: #{tpu_custom_call.1} parent=1 // pred_check_branch
      %10 = sbr.rel (0) target = $region5
    $region4: #{tpu_custom_call.1} parent=1 // pred_region
      _
    $region5: #{tpu_custom_call.1} parent=1 // pred_fallthru
      _
    // Predicated region
    $region6: #{tpu_custom_call.1} parent=1 // pred_check
      _
    $region7: #{tpu_custom_call.1} parent=1 // pred_check_branch
      %12 = sbr.rel (0) target = $region9
    $region8: #{tpu_custom_call.1} parent=1 // pred_region
      _
    $region9: #{tpu_custom_call.1} parent=1 // pred_fallthru
      _
    // Predicated region
    $region10: #{tpu_custom_call.1} parent=1 // pred_check
      _
    $region11: #{tpu_custom_call.1} parent=1 // pred_check_branch
      %14 = sbr.rel (0) target = $region13
    $region12: #{tpu_custom_call.1} parent=1 // pred_region
      _
    $region13: #{tpu_custom_call.1} parent=1 // pred_fallthru
      _
    %v15 = vld [vmem:[%s0] sm:$0x1]
    %v16 = vld [vmem:[%s1] sm:$0xff]
    %v17 = vld [vmem:[%s1 + $0x8] sm:$0xff]
    %v18 = vld [vmem:[%s1 + $0x10] sm:$0xff]
    %v19 = vld [vmem:[%s1 + $0x18] sm:$0xff]
    %v20 = vld [vmem:[%s1 + $0x20] sm:$0xff]
    %v21 = vld [vmem:[%s1 + $0x28] sm:$0xff]
    %v22 = vld [vmem:[%s1 + $0x30] sm:$0xff]
    %v23 = vld [vmem:[%s1 + $0x38] sm:$0xff]
    %v24 = vld [vmem:[%s2] sm:$0x1]
    %vm25 = vcmask 523264
    %v27 = vsel %vm25, %v15, 0
    %29 = vmatprep.subr.mxu0 0.0
    %30 = vmatpush1.msra.mxu0 %v16
    %31 = vmatprep.subr.mxu0 0.0
    %32 = vmatpush1.msra.mxu0 %v17
    %33 = vmatprep.subr.mxu0 0.0
    %34 = vmatpush1.msra.mxu0 %v18
    %35 = vmatprep.subr.mxu0 0.0
    %36 = vmatpush1.msra.mxu0 %v19
    %37 = vmatprep.subr.mxu0 0.0
    %38 = vmatpush1.msra.mxu0 %v20
    %39 = vmatprep.subr.mxu0 0.0
    %40 = vmatpush1.msra.mxu0 %v21
    %41 = vmatprep.subr.mxu0 0.0
    %42 = vmatpush1.msra.mxu0 %v22
    %43 = vmatprep.subr.mxu0 0.0
    %44 = vmatpush1.msra.mxu0 %v23
    %45 = vmatprep.subr.mxu0 0.0
    %46 = vmatpush1.msra.mxu0 0.0
    %47 = vmatprep.subr.mxu0 0.0
    %48 = vmatpush1.msra.mxu0 0.0
    %49 = vmatprep.subr.mxu0 0.0
    %50 = vmatpush1.msra.mxu0 0.0
    %51 = vmatprep.subr.mxu0 0.0
    %52 = vmatpush1.msra.mxu0 0.0
    %53 = vmatprep.subr.mxu0 0.0
    %54 = vmatpush1.msra.mxu0 0.0
    %55 = vmatprep.subr.mxu0 0.0
    %56 = vmatpush1.msra.mxu0 0.0
    %57 = vmatprep.subr.mxu0 0.0
    %58 = vmatpush1.msra.mxu0 0.0
    %59 = vmatprep.subr.mxu0 0.0
    %60 = vmatpush1.msra.mxu0 0.0
    %61 = vmatprep.subr.mxu0 0.0
    %62 = vmatpush1.msra.mxu0 0.0
    %63 = vmatprep.subr.mxu0 0.0
    %64 = vmatpush1.msra.mxu0 0.0
    %65 = vmatprep.subr.mxu0 0.0
    %66 = vmatpush1.msra.mxu0 0.0
    %67 = vmatprep.subr.mxu0 0.0
    %68 = vmatpush1.msra.mxu0 0.0
    %69 = vmatprep.subr.mxu0 0.0
    %70 = vmatpush1.msra.mxu0 0.0
    %71 = vmatprep.subr.mxu0 0.0
    %72 = vmatpush1.msra.mxu0 0.0
    %73 = vmatprep.subr.mxu0 0.0
    %74 = vmatpush1.msra.mxu0 0.0
    %75 = vmatprep.subr.mxu0 0.0
    %76 = vmatpush1.msra.mxu0 0.0
    %77 = vmatprep.subr.mxu0 0.0
    %78 = vmatpush1.msra.mxu0 0.0
    %79 = vmatprep.subr.mxu0 0.0
    %80 = vmatpush1.msra.mxu0 0.0
    %81 = vmatprep.subr.mxu0 0.0
    %82 = vmatpush1.msra.mxu0 0.0
    %83 = vmatprep.subr.mxu0 0.0
    %84 = vmatpush1.msra.mxu0 0.0
    %85 = vmatprep.subr.mxu0 0.0
    %86 = vmatpush1.msra.mxu0 0.0
    %87 = vmatprep.subr.mxu0 0.0
    %88 = vmatpush1.msra.mxu0 0.0
    %89 = vmatprep.subr.mxu0 0.0
    %90 = vmatpush1.msra.mxu0 0.0
    %91 = vmatprep.subr.mxu0 0.0
    %92 = vmatpush1.msra.mxu0 0.0
    %93 = vmatprep.mubr.f32.mxu0 0.0
    %94 = vmatmul.mubr.f32.gmra.mrb[0].mxu0 %v27
    %v95 = vpop.f32.mrb[0].mxu0
    %v96 = vadd.f32 %v24, %v95
    %v97 = vpop.f32.mrb[0].mxu0
    %98 = vdwg.mxu0
    %v99 = vmax.f32 %v96, 0.0
    %vm100 = vcmask 57344
    %101 = vst.msk [vmem:[#allocation2] sm:$0x1] %vm100, %v99
    // Predicated region
    $region14: #{tpu_custom_call.1} parent=1 // pred_check
      _
    $region15: #{tpu_custom_call.1} parent=1 // pred_check_branch
      %103 = sbr.rel (0) target = $region17
    $region16: #{tpu_custom_call.1} parent=1 // pred_region
      %s105 = ssub.s32 16, 16
      %106 = vsyncadd [#allocation3], %s105
      %s108 = sshll.u32 [#allocation2], 4
      %s109 = int_to_ptr.vmem [resolvable:$true] %s108
      %111 = dma.vmem_to_hbm [thread:$0]  %s109, 16, %s3, [#allocation3]
    $region17: #{tpu_custom_call.1} parent=1 // pred_fallthru
      _
    // Predicated region
    $region18: #{tpu_custom_call.1} parent=1 // pred_check
      _
    $region19: #{tpu_custom_call.1} parent=1 // pred_check_branch
      %113 = sbr.rel (0) target = $region21
    $region20: #{tpu_custom_call.1} parent=1 // pred_region
      %114 = dma.done [#allocation3], 16
    $region21: #{tpu_custom_call.1} parent=1 // pred_fallthru
      _
    %115 = vsyncpa [#allocation3], 1

</llo_original>
